<compile_context>
chip_gen: v7x
topology: tpu7x:2x2x1
jax: 0.10.0
libtpu: 0.0.40
codegen_flags: <defaults>
</compile_context>

<pallas_src>
import functools

import numpy as np
import jax
import jax.numpy as jnp
from jax.experimental import pallas as pl
from jax.experimental.pallas import tpu as pltpu

_LANES = 128


def _adaptive_avg_pool_matrix(in_size: int, out_size: int) -> np.ndarray:
    """Row-averaging matrix P of shape (out, in): P @ v == adaptive_avg_pool1d(v)."""
    m = np.zeros((out_size, in_size), np.float32)
    for i in range(out_size):
        start = (i * in_size) // out_size
        end = int(np.ceil((i + 1) * in_size / out_size))
        m[i, start:end] = 1.0 / float(end - start)
    return m


def _build_pool_matrix(h, w, mh, mw, p_pad) -> np.ndarray:
    """Channel-shared pooling matrix (H*W, P_pad): column (i*mw+j) is the mean
    over the adaptive-pool block (i, j); columns >= mh*mw are zero padding."""
    ph = _adaptive_avg_pool_matrix(h, mh)      # (mh, H)
    pw = _adaptive_avg_pool_matrix(w, mw)      # (mw, W)
    m = np.einsum("iy,jx->yxij", ph, pw).reshape(h * w, mh * mw)
    out = np.zeros((h * w, p_pad), np.float32)
    out[:, : mh * mw] = m
    return out


def _build_conv_matrices(w_conv, mh, mw, p_pad) -> np.ndarray:
    """Per-channel conv matrices (C, P_pad, P_pad): the 3x3 / stride 1 /
    padding 1 conv on the (mh, mw) pooled grid, flattened row-major.
    s_in[b, p] = sum_c sum_{p'} pooled[b, c, p'] * M[c, p', p]."""
    w = np.asarray(w_conv, np.float32)         # (C, 3, 3)
    C = w.shape[0]
    m = np.zeros((C, p_pad, p_pad), np.float32)
    for i in range(mh):
        for j in range(mw):
            p = i * mw + j
            for dy in range(3):
                for dx in range(3):
                    ii, jj = i + dy - 1, j + dx - 1
                    if 0 <= ii < mh and 0 <= jj < mw:
                        m[:, ii * mw + jj, p] = w[:, dy, dx]
    return m


def _make_mask_s_kernel(num_channels, batch, conv_bias, gate_eps):
    bias = np.float32(conv_bias)
    inv_eps = np.float32(1.0 / gate_eps)

    def kernel(xf_ref, mpool_ref, mconv_ref, g_ref, hard_ref, soft_ref):
        # Stage 1: adaptive avg-pool for all (c, b) rows as ONE bf16 MXU matmul
        # against the channel-shared pooling matrix (f32 accumulation).
        pooled = jnp.dot(xf_ref[...], mpool_ref[...],
                         preferred_element_type=jnp.float32)      # (C*B, P_pad)
        pooled = pooled.astype(jnp.bfloat16)
        # Stage 2: 3x3 conv (planes -> 1) on the tiny pooled slab, folded into
        # per-channel (P_pad, P_pad) matrices.  C is small here, so a static
        # unrolled loop of plain 2-D dots is the cheapest / safest lowering.
        # TODO(synk): batched dot_general (or 9-tap shift form) at large C.
        s_in = None
        for c in range(num_channels):
            part = jnp.dot(pooled[c * batch:(c + 1) * batch, :], mconv_ref[c],
                           preferred_element_type=jnp.float32)    # (B, P_pad)
            s_in = part if s_in is None else s_in + part
        s_in = s_in + bias
        # GumbelSoftmax gate (noise g precomputed in the wrapper); f32 VPU math.
        soft = jax.nn.sigmoid((s_in + g_ref[...]) * inv_eps)
        hard_ref[...] = (soft >= 0.5).astype(jnp.float32)  # straight-through fwd value
        soft_ref[...] = soft                                # lane-dense slab stores

    return kernel


@functools.lru_cache(maxsize=None)
def _build_mask_s_forward(batch, channels, h, w, mh, mw, conv_bias, gate_eps):
    P = mh * mw
    p_pad = -(-P // _LANES) * _LANES
    kernel = _make_mask_s_kernel(channels, batch, conv_bias, gate_eps)
    vmem = pl.BlockSpec(memory_space=pltpu.MemorySpace.VMEM)
    call = pl.pallas_call(
        kernel,
        out_shape=(jax.ShapeDtypeStruct((batch, p_pad), jnp.float32),   # hard
                   jax.ShapeDtypeStruct((batch, p_pad), jnp.float32)),  # soft
        in_specs=[vmem, vmem, vmem, vmem],
        out_specs=(vmem, vmem),
    )

    def fwd(x, u, mpool, mconv):
        # Channel-major rows so the stage-2 per-channel slices are contiguous.
        # (At realistic sizes fuse this transpose into the producer of x.)
        xf = jnp.transpose(x, (1, 0, 2, 3)).reshape(channels * batch, h * w)
        xf = xf.astype(jnp.bfloat16)
        uf = u.reshape(batch, P).astype(jnp.float32)
        g = jnp.log(uf + 1e-8) - jnp.log(1.0 - uf + 1e-8)   # logistic (Gumbel-diff) noise
        g_pad = jnp.pad(g, ((0, 0), (0, p_pad - P)))
        hard_f, soft_f = call(xf, mpool, mconv, g_pad)
        hard = hard_f[:, :P].reshape(batch, 1, mh, mw)
        soft = soft_f[:, :P].reshape(batch, 1, mh, mw)
        # L1 norm over (c, h, w) of the 0/1 hard mask == its sum (done host-side).
        norm = jnp.sum(hard, axis=(1, 2, 3))
        return (hard, soft), norm

    return jax.jit(fwd)


def init_mask_s(h, w, planes, block_w, block_h, eps=0.66667, bias=-1, *, key):
    mask_h = int(np.ceil(h / block_h))
    mask_w = int(np.ceil(w / block_w))
    P = mask_h * mask_w
    p_pad = -(-P // _LANES) * _LANES
    # Deterministic Conv2d(planes, 1, 3, padding=1) weight init (kaiming-uniform-like).
    fan_in = planes * 9
    bound = 1.0 / np.sqrt(fan_in)
    w_conv = np.asarray(
        jax.random.uniform(key, (planes, 3, 3), jnp.float32, minval=-bound, maxval=bound))
    return dict(
        h=h, w=w, planes=planes,
        mask_h=mask_h, mask_w=mask_w, p_pad=p_pad,
        gate_eps=float(eps),
        # nn.Conv2d(..., bias=(bias >= 0)); default bias=-1  =>  no bias term.
        conv_bias=float(bias) if bias >= 0 else 0.0,
        w_conv=w_conv,
        # bf16 weight matrices (halves weight HBM traffic; f32 accumulation in-kernel).
        pool_matrix=jnp.asarray(
            _build_pool_matrix(h, w, mask_h, mask_w, p_pad), dtype=jnp.bfloat16),
        conv_matrices=jnp.asarray(
            _build_conv_matrices(w_conv, mask_h, mask_w, p_pad), dtype=jnp.bfloat16),
        ele_num_s=jnp.array([float(P)], jnp.float32),
    )


def mask_s_forward(params, x, u):
    """x: (B, C, H, W) float32 (NCHW).  u: uniform samples (B, mask_h, mask_w)."""
    B, C, H, W = x.shape
    fwd = _build_mask_s_forward(B, C, H, W, params["mask_h"], params["mask_w"],
                                params["conv_bias"], params["gate_eps"])
    (hard, soft), norm = fwd(x, u, params["pool_matrix"], params["conv_matrices"])
    # TODO(synk): the reference calls torch.norm on the *tuple* returned by
    # GumbelSoftmax (which would error in PyTorch); following the original
    # DGNet semantics the L1 norm is taken on the hard mask (out_hard).
    return (hard, soft), norm, params["ele_num_s"]


def _reference_forward(x, params, u):
    """Plain-JAX f32 reference (valid when H % mask_h == 0 and W % mask_w == 0)."""
    B, C, H, W = x.shape
    mh, mw = params["mask_h"], params["mask_w"]
    pooled = x.reshape(B, C, mh, H // mh, mw, W // mw).mean(axis=(3, 5))
    s_in = jax.lax.conv_general_dilated(
        pooled, jnp.asarray(params["w_conv"])[None], (1, 1), ((1, 1), (1, 1)),
        dimension_numbers=("NCHW", "OIHW", "NCHW"),
        precision=jax.lax.Precision.HIGHEST) + params["conv_bias"]
    g = jnp.log(u + 1e-8) - jnp.log(1.0 - u + 1e-8)
    logits = s_in[:, 0] + g
    soft = jax.nn.sigmoid(logits / params["gate_eps"])
    hard = (soft >= 0.5).astype(jnp.float32)
    return hard[:, None], soft[:, None]


if __name__ == "__main__":
    key = jax.random.PRNGKey(0)
    kx, kw, ku = jax.random.split(key, 3)

    B, C, H, W = 2, 4, 16, 16
    block_h = block_w = 4  # -> mask_h = mask_w = 4

    params = init_mask_s(H, W, C, block_w=block_w, block_h=block_h, key=kw)
    x = jax.random.normal(kx, (B, C, H, W), jnp.float32)
    # Uniform samples for the Gumbel gate (torch's in-place .uniform_() has no
    # JAX analogue; the RNG is glue, the gate math runs inside the kernel).
    u = jax.random.uniform(ku, (B, params["mask_h"], params["mask_w"]), jnp.float32)

    (mask_hard, mask_soft), norm, norm_t = mask_s_forward(params, x, u)
    jax.block_until_ready((mask_hard, mask_soft, norm, norm_t))

    # --- sanity checks against a plain-JAX f32 reference ---
    ref_hard, ref_soft = _reference_forward(x, params, u)
    assert mask_hard.shape == (B, 1, 4, 4) and mask_soft.shape == (B, 1, 4, 4)
    assert norm.shape == (B,) and norm_t.shape == (1,)
    # bf16 matmul operands (vs f32 reference) -> loosened tolerance on the soft gate.
    assert jnp.allclose(mask_soft, ref_soft, atol=1e-2, rtol=1e-2), (
        float(jnp.max(jnp.abs(mask_soft - ref_soft))))
    # hard mask must agree everywhere except where soft is within the bf16 noise
    # band of the 0.5 threshold.
    assert bool(jnp.all((mask_hard == ref_hard) | (jnp.abs(ref_soft - 0.5) < 1e-2)))
    # wrapper L1 norm must equal the count of ones in the hard mask
    assert bool(jnp.array_equal(norm, jnp.sum(mask_hard, axis=(1, 2, 3))))
    assert float(norm_t[0]) == float(params["mask_h"] * params["mask_w"])

    print("KERNEL_OK")
</pallas_src>

<mosaic_0001>
module attributes {stable_mosaic.version = 11 : i64} {
  func.func @kernel(%arg0: memref<8x256xbf16, #tpu.memory_space<vmem>>, %arg1: memref<256x128xbf16, #tpu.memory_space<vmem>>, %arg2: memref<4x128x128xbf16, #tpu.memory_space<vmem>>, %arg3: memref<2x128xf32, #tpu.memory_space<vmem>>, %arg4: memref<2x128xf32, #tpu.memory_space<vmem>>, %arg5: memref<2x128xf32, #tpu.memory_space<vmem>>) attributes {dimension_semantics = [], scalar_prefetch = 0 : i64, scratch_operands = 0 : i64, tpu.core_type = #tpu.core_type<tc>} {
    %c0 = arith.constant 0 : index
    %c0_0 = arith.constant 0 : index
    %0 = vector.load %arg0[%c0, %c0_0] : memref<8x256xbf16, #tpu.memory_space<vmem>>, vector<8x256xbf16>
    %c0_1 = arith.constant 0 : index
    %c0_2 = arith.constant 0 : index
    %1 = vector.load %arg1[%c0_1, %c0_2] : memref<256x128xbf16, #tpu.memory_space<vmem>>, vector<256x128xbf16>
    %cst = arith.constant dense<0.000000e+00> : vector<8x128xf32>
    %2 = tpu.matmul %0, %1, %cst {dimension_numbers = #tpu.dot_dimension_numbers<[1], [0], [0], [1], [0, 0, 1, 1], [], []>} : vector<8x256xbf16>, vector<256x128xbf16>, vector<8x128xf32> -> vector<8x128xf32>
    %3 = arith.truncf %2 : vector<8x128xf32> to vector<8x128xbf16>
    %4 = vector.extract_strided_slice %3 {offsets = [0, 0], sizes = [2, 128], strides = [1, 1]} : vector<8x128xbf16> to vector<2x128xbf16>
    %c0_3 = arith.constant 0 : index
    %c0_4 = arith.constant 0 : index
    %c0_5 = arith.constant 0 : index
    %5 = vector.load %arg2[%c0_3, %c0_4, %c0_5] : memref<4x128x128xbf16, #tpu.memory_space<vmem>>, vector<1x128x128xbf16>
    %6 = vector.shape_cast %5 : vector<1x128x128xbf16> to vector<128x128xbf16>
    %cst_6 = arith.constant dense<0.000000e+00> : vector<2x128xf32>
    %7 = tpu.matmul %4, %6, %cst_6 {dimension_numbers = #tpu.dot_dimension_numbers<[1], [0], [0], [1], [0, 0, 1, 1], [], []>} : vector<2x128xbf16>, vector<128x128xbf16>, vector<2x128xf32> -> vector<2x128xf32>
    %8 = vector.extract_strided_slice %3 {offsets = [2, 0], sizes = [2, 128], strides = [1, 1]} : vector<8x128xbf16> to vector<2x128xbf16>
    %c1 = arith.constant 1 : index
    %c0_7 = arith.constant 0 : index
    %c0_8 = arith.constant 0 : index
    %9 = vector.load %arg2[%c1, %c0_7, %c0_8] : memref<4x128x128xbf16, #tpu.memory_space<vmem>>, vector<1x128x128xbf16>
    %10 = vector.shape_cast %9 : vector<1x128x128xbf16> to vector<128x128xbf16>
    %cst_9 = arith.constant dense<0.000000e+00> : vector<2x128xf32>
    %11 = tpu.matmul %8, %10, %cst_9 {dimension_numbers = #tpu.dot_dimension_numbers<[1], [0], [0], [1], [0, 0, 1, 1], [], []>} : vector<2x128xbf16>, vector<128x128xbf16>, vector<2x128xf32> -> vector<2x128xf32>
    %12 = arith.addf %7, %11 : vector<2x128xf32>
    %13 = vector.extract_strided_slice %3 {offsets = [4, 0], sizes = [2, 128], strides = [1, 1]} : vector<8x128xbf16> to vector<2x128xbf16>
    %c2 = arith.constant 2 : index
    %c0_10 = arith.constant 0 : index
    %c0_11 = arith.constant 0 : index
    %14 = vector.load %arg2[%c2, %c0_10, %c0_11] : memref<4x128x128xbf16, #tpu.memory_space<vmem>>, vector<1x128x128xbf16>
    %15 = vector.shape_cast %14 : vector<1x128x128xbf16> to vector<128x128xbf16>
    %cst_12 = arith.constant dense<0.000000e+00> : vector<2x128xf32>
    %16 = tpu.matmul %13, %15, %cst_12 {dimension_numbers = #tpu.dot_dimension_numbers<[1], [0], [0], [1], [0, 0, 1, 1], [], []>} : vector<2x128xbf16>, vector<128x128xbf16>, vector<2x128xf32> -> vector<2x128xf32>
    %17 = arith.addf %12, %16 : vector<2x128xf32>
    %18 = vector.extract_strided_slice %3 {offsets = [6, 0], sizes = [2, 128], strides = [1, 1]} : vector<8x128xbf16> to vector<2x128xbf16>
    %c3 = arith.constant 3 : index
    %c0_13 = arith.constant 0 : index
    %c0_14 = arith.constant 0 : index
    %19 = vector.load %arg2[%c3, %c0_13, %c0_14] : memref<4x128x128xbf16, #tpu.memory_space<vmem>>, vector<1x128x128xbf16>
    %20 = vector.shape_cast %19 : vector<1x128x128xbf16> to vector<128x128xbf16>
    %cst_15 = arith.constant dense<0.000000e+00> : vector<2x128xf32>
    %21 = tpu.matmul %18, %20, %cst_15 {dimension_numbers = #tpu.dot_dimension_numbers<[1], [0], [0], [1], [0, 0, 1, 1], [], []>} : vector<2x128xbf16>, vector<128x128xbf16>, vector<2x128xf32> -> vector<2x128xf32>
    %22 = arith.addf %17, %21 : vector<2x128xf32>
    %cst_16 = arith.constant 0.000000e+00 : f32
    %23 = vector.broadcast %cst_16 : f32 to vector<2x128xf32>
    %24 = arith.addf %22, %23 : vector<2x128xf32>
    %c0_17 = arith.constant 0 : index
    %c0_18 = arith.constant 0 : index
    %25 = vector.load %arg3[%c0_17, %c0_18] : memref<2x128xf32, #tpu.memory_space<vmem>>, vector<2x128xf32>
    %26 = arith.addf %24, %25 : vector<2x128xf32>
    %cst_19 = arith.constant 1.49999249 : f32
    %27 = vector.broadcast %cst_19 : f32 to vector<2x128xf32>
    %28 = arith.mulf %26, %27 : vector<2x128xf32>
    %29 = arith.negf %28 : vector<2x128xf32>
    %30 = math.exp %29 : vector<2x128xf32>
    %cst_20 = arith.constant 1.000000e+00 : f32
    %31 = vector.broadcast %cst_20 : f32 to vector<2x128xf32>
    %32 = arith.addf %31, %30 : vector<2x128xf32>
    %33 = arith.divf %31, %32 : vector<2x128xf32>
    %cst_21 = arith.constant 5.000000e-01 : f32
    %34 = vector.broadcast %cst_21 : f32 to vector<2x128xf32>
    %35 = arith.cmpf oge, %33, %34 : vector<2x128xf32>
    %36 = arith.extui %35 : vector<2x128xi1> to vector<2x128xi32>
    %37 = arith.sitofp %36 : vector<2x128xi32> to vector<2x128xf32>
    %c0_22 = arith.constant 0 : index
    %c0_23 = arith.constant 0 : index
    %38 = vector.load %arg4[%c0_22, %c0_23] : memref<2x128xf32, #tpu.memory_space<vmem>>, vector<2x128xf32>
    tpu.vector_store %arg4[%c0_22, %c0_23], %37 {strides = array<i32>} : memref<2x128xf32, #tpu.memory_space<vmem>>, vector<2x128xf32>,
    %c0_24 = arith.constant 0 : index
    %c0_25 = arith.constant 0 : index
    %39 = vector.load %arg5[%c0_24, %c0_25] : memref<2x128xf32, #tpu.memory_space<vmem>>, vector<2x128xf32>
    tpu.vector_store %arg5[%c0_24, %c0_25], %33 {strides = array<i32>} : memref<2x128xf32, #tpu.memory_space<vmem>>, vector<2x128xf32>,
    return
  }
}

</mosaic_0001>

<llo_original>
// kernel: fwd.1
$region0: #{fwd.1}
  #allocation0 [shape = 'u32[]', space=smem, size = 0x4, offset = 0x4, fixed_abs, tag = 'smem constant byte address 0x4 - core index']
  #allocation1 [shape = 'u32[144,128]{1,0:T(1,128)}', space=vmem, size = 0x12000, scoped, tag = 'internal scratch']
  %s0 = inlined_call_operand.vmem [shape: bf16[8,256], index: 0, kind: input, shape index: {}]
  %s1 = inlined_call_operand.vmem [shape: bf16[256,128], index: 1, kind: input, shape index: {}]
  %s2 = inlined_call_operand.vmem [shape: bf16[4,128,128], index: 2, kind: input, shape index: {}]
  %s3 = inlined_call_operand.vmem [shape: f32[2,128], index: 3, kind: input, shape index: {}]
  %s4 = inlined_call_operand.vmem [shape: f32[2,128], index: 4, kind: output, shape index: {0}]
  %s5 = inlined_call_operand.vmem [shape: f32[2,128], index: 5, kind: output, shape index: {1}]
  %6 = xla_tuple %s4, %s5
  %s7 = sld [smem:[#allocation0]]
  $region34: #{fwd.1} parent=0
    _
  %s9 = ssub.s32 1, %s7
  %s10 = scalar_select 0, %s9, %s7
  // Predicated region
  $region2: #{fwd.1} parent=0 // pred_check
    _
  $region3: #{fwd.1} parent=0 // pred_check_branch
    %12 = sbr.rel (0) target = $region5
  $region4: #{fwd.1} parent=0 // pred_region
    _
  $region5: #{fwd.1} parent=0 // pred_fallthru
    _
  // Predicated region
  $region6: #{fwd.1} parent=0 // pred_check
    _
  $region7: #{fwd.1} parent=0 // pred_check_branch
    %14 = sbr.rel (0) target = $region9
  $region8: #{fwd.1} parent=0 // pred_region
    _
  $region9: #{fwd.1} parent=0 // pred_fallthru
    _
  // Predicated region
  $region10: #{fwd.1} parent=0 // pred_check
    _
  $region11: #{fwd.1} parent=0 // pred_check_branch
    %16 = sbr.rel (0) target = $region13
  $region12: #{fwd.1} parent=0 // pred_region
    _
  $region13: #{fwd.1} parent=0 // pred_fallthru
    _
  // Predicated region
  $region14: #{fwd.1} parent=0 // pred_check
    _
  $region15: #{fwd.1} parent=0 // pred_check_branch
    %18 = sbr.rel (0) target = $region17
  $region16: #{fwd.1} parent=0 // pred_region
    _
  $region17: #{fwd.1} parent=0 // pred_fallthru
    _
  %v20 = vld [vmem:[%s0] sm:$0xff]
  %v21 = vld [vmem:[%s1] sm:$0xf]
  %v22 = vld [vmem:[%s1 + $0x4] sm:$0xf]
  %v23 = vld [vmem:[%s1 + $0x8] sm:$0xf]
  %v24 = vld [vmem:[%s1 + $0xc] sm:$0xf]
  %v25 = vld [vmem:[%s1 + $0x10] sm:$0xf]
  %v26 = vld [vmem:[%s1 + $0x14] sm:$0xf]
  %v27 = vld [vmem:[%s1 + $0x18] sm:$0xf]
  %v28 = vld [vmem:[%s1 + $0x1c] sm:$0xf]
  %v29 = vld [vmem:[%s1 + $0x20] sm:$0xf]
  %v30 = vld [vmem:[%s1 + $0x24] sm:$0xf]
  %v31 = vld [vmem:[%s1 + $0x28] sm:$0xf]
  %v32 = vld [vmem:[%s1 + $0x2c] sm:$0xf]
  %v33 = vld [vmem:[%s1 + $0x30] sm:$0xf]
  %v34 = vld [vmem:[%s1 + $0x34] sm:$0xf]
  %v35 = vld [vmem:[%s1 + $0x38] sm:$0xf]
  %v36 = vld [vmem:[%s1 + $0x3c] sm:$0xf]
  %v37 = vld [vmem:[%s1 + $0x40] sm:$0xf]
  %v38 = vld [vmem:[%s1 + $0x44] sm:$0xf]
  %v39 = vld [vmem:[%s1 + $0x48] sm:$0xf]
  %v40 = vld [vmem:[%s1 + $0x4c] sm:$0xf]
  %v41 = vld [vmem:[%s1 + $0x50] sm:$0xf]
  %v42 = vld [vmem:[%s1 + $0x54] sm:$0xf]
  %v43 = vld [vmem:[%s1 + $0x58] sm:$0xf]
  %v44 = vld [vmem:[%s1 + $0x5c] sm:$0xf]
  %v45 = vld [vmem:[%s1 + $0x60] sm:$0xf]
  %v46 = vld [vmem:[%s1 + $0x64] sm:$0xf]
  %v47 = vld [vmem:[%s1 + $0x68] sm:$0xf]
  %v48 = vld [vmem:[%s1 + $0x6c] sm:$0xf]
  %v49 = vld [vmem:[%s1 + $0x70] sm:$0xf]
  %v50 = vld [vmem:[%s1 + $0x74] sm:$0xf]
  %v51 = vld [vmem:[%s1 + $0x78] sm:$0xf]
  %v52 = vld [vmem:[%s1 + $0x7c] sm:$0xf]
  %v54 = vunpack.c.l.b16 %v20
  %v55 = vunpack.c.h.b16 %v20
  %v56 = vpack.c.b16 %v54, %v54
  %v57 = vpack.c.b16 %v55, %v55
  %v92 = vunpack.c.l.b16 %v21
  %v93 = vunpack.c.l.b16 %v22
  %v94 = vunpack.c.l.b16 %v23
  %v95 = vunpack.c.l.b16 %v24
  %v96 = vunpack.c.l.b16 %v25
  %v97 = vunpack.c.l.b16 %v26
  %v98 = vunpack.c.l.b16 %v27
  %v99 = vunpack.c.l.b16 %v28
  %v100 = vunpack.c.l.b16 %v29
  %v101 = vunpack.c.l.b16 %v30
  %v102 = vunpack.c.l.b16 %v31
  %v103 = vunpack.c.l.b16 %v32
  %v104 = vunpack.c.l.b16 %v33
  %v105 = vunpack.c.l.b16 %v34
  %v106 = vunpack.c.l.b16 %v35
  %v107 = vunpack.c.l.b16 %v36
  %v108 = vunpack.c.l.b16 %v37
  %v109 = vunpack.c.l.b16 %v38
  %v110 = vunpack.c.l.b16 %v39
  %v111 = vunpack.c.l.b16 %v40
  %v112 = vunpack.c.l.b16 %v41
  %v113 = vunpack.c.l.b16 %v42
  %v114 = vunpack.c.l.b16 %v43
  %v115 = vunpack.c.l.b16 %v44
  %v116 = vunpack.c.l.b16 %v45
  %v117 = vunpack.c.l.b16 %v46
  %v118 = vunpack.c.l.b16 %v47
  %v119 = vunpack.c.l.b16 %v48
  %v120 = vunpack.c.l.b16 %v49
  %v121 = vunpack.c.l.b16 %v50
  %v122 = vunpack.c.l.b16 %v51
  %v123 = vunpack.c.l.b16 %v52
  %v124 = vpack.c.b16 %v93, %v92
  %v125 = vpack.c.b16 %v95, %v94
  %v126 = vpack.c.b16 %v97, %v96
  %v127 = vpack.c.b16 %v99, %v98
  %v128 = vpack.c.b16 %v101, %v100
  %v129 = vpack.c.b16 %v103, %v102
  %v130 = vpack.c.b16 %v105, %v104
  %v131 = vpack.c.b16 %v107, %v106
  %v132 = vpack.c.b16 %v109, %v108
  %v133 = vpack.c.b16 %v111, %v110
  %v134 = vpack.c.b16 %v113, %v112
  %v135 = vpack.c.b16 %v115, %v114
  %v136 = vpack.c.b16 %v117, %v116
  %v137 = vpack.c.b16 %v119, %v118
  %v138 = vpack.c.b16 %v121, %v120
  %v139 = vpack.c.b16 %v123, %v122
  %156 = vmatprep.subr.bf16.mxu0 0
  %157 = vmatpush1.bf16.msra.mxu0 %v124
  %158 = vmatprep.subr.bf16.mxu0 0
  %159 = vmatpush1.bf16.msra.mxu0 %v125
  %160 = vmatprep.subr.bf16.mxu0 0
  %161 = vmatpush1.bf16.msra.mxu0 %v126
  %162 = vmatprep.subr.bf16.mxu0 0
  %163 = vmatpush1.bf16.msra.mxu0 %v127
  %164 = vmatprep.subr.bf16.mxu0 0
  %165 = vmatpush1.bf16.msra.mxu0 %v128
  %166 = vmatprep.subr.bf16.mxu0 0
  %167 = vmatpush1.bf16.msra.mxu0 %v129
  %168 = vmatprep.subr.bf16.mxu0 0
  %169 = vmatpush1.bf16.msra.mxu0 %v130
  %170 = vmatprep.subr.bf16.mxu0 0
  %171 = vmatpush1.bf16.msra.mxu0 %v131
  %172 = vmatprep.subr.bf16.mxu0 0
  %173 = vmatpush1.bf16.msra.mxu0 %v132
  %174 = vmatprep.subr.bf16.mxu0 0
  %175 = vmatpush1.bf16.msra.mxu0 %v133
  %176 = vmatprep.subr.bf16.mxu0 0
  %177 = vmatpush1.bf16.msra.mxu0 %v134
  %178 = vmatprep.subr.bf16.mxu0 0
  %179 = vmatpush1.bf16.msra.mxu0 %v135
  %180 = vmatprep.subr.bf16.mxu0 0
  %181 = vmatpush1.bf16.msra.mxu0 %v136
  %182 = vmatprep.subr.bf16.mxu0 0
  %183 = vmatpush1.bf16.msra.mxu0 %v137
  %184 = vmatprep.subr.bf16.mxu0 0
  %185 = vmatpush1.bf16.msra.mxu0 %v138
  %186 = vmatprep.subr.bf16.mxu0 0
  %187 = vmatpush1.bf16.msra.mxu0 %v139
  %188 = vmatprep.mubr.bf16.mxu0 %v57
  %189 = vmatmul.mubr.bf16.gmra.mrb[0].mxu0 %v56
  %v190 = vpop.f32.mrb[0].mxu0
  %v191 = vadd.f32 0.0, %v190
  %v192 = vpop.f32.mrb[0].mxu0
  %v193 = vpop.f32.mrb[0].mxu0
  %v194 = vpop.f32.mrb[0].mxu0
  %195 = vdwg.mxu0
  %v196 = vpack.c.bf16 %v191, %v191
  %v197 = vld [vmem:[%s2] sm:$0xf]
  %v198 = vld [vmem:[%s2 + $0x4] sm:$0xf]
  %v199 = vld [vmem:[%s2 + $0x8] sm:$0xf]
  %v200 = vld [vmem:[%s2 + $0xc] sm:$0xf]
  %v201 = vld [vmem:[%s2 + $0x10] sm:$0xf]
  %v202 = vld [vmem:[%s2 + $0x14] sm:$0xf]
  %v203 = vld [vmem:[%s2 + $0x18] sm:$0xf]
  %v204 = vld [vmem:[%s2 + $0x1c] sm:$0xf]
  %v205 = vld [vmem:[%s2 + $0x20] sm:$0xf]
  %v206 = vld [vmem:[%s2 + $0x24] sm:$0xf]
  %v207 = vld [vmem:[%s2 + $0x28] sm:$0xf]
  %v208 = vld [vmem:[%s2 + $0x2c] sm:$0xf]
  %v209 = vld [vmem:[%s2 + $0x30] sm:$0xf]
  %v210 = vld [vmem:[%s2 + $0x34] sm:$0xf]
  %v211 = vld [vmem:[%s2 + $0x38] sm:$0xf]
  %v212 = vld [vmem:[%s2 + $0x3c] sm:$0xf]
  %s213 = scalar_lea.vmem %s2, 64
  %v214 = vld [vmem:[%s213] sm:$0xf]
  %v215 = vld [vmem:[%s213 + $0x4] sm:$0xf]
  %v216 = vld [vmem:[%s213 + $0x8] sm:$0xf]
  %v217 = vld [vmem:[%s213 + $0xc] sm:$0xf]
  %v218 = vld [vmem:[%s213 + $0x10] sm:$0xf]
  %v219 = vld [vmem:[%s213 + $0x14] sm:$0xf]
  %v220 = vld [vmem:[%s213 + $0x18] sm:$0xf]
  %v221 = vld [vmem:[%s213 + $0x1c] sm:$0xf]
  %v222 = vld [vmem:[%s213 + $0x20] sm:$0xf]
  %v223 = vld [vmem:[%s213 + $0x24] sm:$0xf]
  %v224 = vld [vmem:[%s213 + $0x28] sm:$0xf]
  %v225 = vld [vmem:[%s213 + $0x2c] sm:$0xf]
  %v226 = vld [vmem:[%s213 + $0x30] sm:$0xf]
  %v227 = vld [vmem:[%s213 + $0x34] sm:$0xf]
  %v228 = vld [vmem:[%s213 + $0x38] sm:$0xf]
  %v229 = vld [vmem:[%s213 + $0x3c] sm:$0xf]
  %v231 = vrot.slane %v196, 1
  %v249 = vunpack.c.l.b16 %v214
  %v250 = vunpack.c.l.b16 %v215
  %v251 = vunpack.c.l.b16 %v216
  %v252 = vunpack.c.l.b16 %v217
  %v253 = vunpack.c.l.b16 %v218
  %v254 = vunpack.c.l.b16 %v219
  %v255 = vunpack.c.l.b16 %v220
  %v256 = vunpack.c.l.b16 %v221
  %v257 = vunpack.c.l.b16 %v222
  %v258 = vunpack.c.l.b16 %v223
  %v259 = vunpack.c.l.b16 %v224
  %v260 = vunpack.c.l.b16 %v225
  %v261 = vunpack.c.l.b16 %v226
  %v262 = vunpack.c.l.b16 %v227
  %v263 = vunpack.c.l.b16 %v228
  %v264 = vunpack.c.l.b16 %v229
  %v265 = vpack.c.b16 %v250, %v249
  %v266 = vpack.c.b16 %v252, %v251
  %v267 = vpack.c.b16 %v254, %v253
  %v268 = vpack.c.b16 %v256, %v255
  %v269 = vpack.c.b16 %v258, %v257
  %v270 = vpack.c.b16 %v260, %v259
  %v271 = vpack.c.b16 %v262, %v261
  %v272 = vpack.c.b16 %v264, %v263
  %281 = vmatprep.subr.bf16.mxu0 0
  %282 = vmatpush1.bf16.msra.mxu0 %v265
  %283 = vmatprep.subr.bf16.mxu0 0
  %284 = vmatpush1.bf16.msra.mxu0 %v266
  %285 = vmatprep.subr.bf16.mxu0 0
  %286 = vmatpush1.bf16.msra.mxu0 %v267
  %287 = vmatprep.subr.bf16.mxu0 0
  %288 = vmatpush1.bf16.msra.mxu0 %v268
  %289 = vmatprep.subr.bf16.mxu0 0
  %290 = vmatpush1.bf16.msra.mxu0 %v269
  %291 = vmatprep.subr.bf16.mxu0 0
  %292 = vmatpush1.bf16.msra.mxu0 %v270
  %293 = vmatprep.subr.bf16.mxu0 0
  %294 = vmatpush1.bf16.msra.mxu0 %v271
  %295 = vmatprep.subr.bf16.mxu0 0
  %296 = vmatpush1.bf16.msra.mxu0 %v272
  %297 = vmatprep.subr.bf16.mxu0 0
  %298 = vmatpush1.bf16.msra.mxu0 0
  %299 = vmatprep.subr.bf16.mxu0 0
  %300 = vmatpush1.bf16.msra.mxu0 0
  %301 = vmatprep.subr.bf16.mxu0 0
  %302 = vmatpush1.bf16.msra.mxu0 0
  %303 = vmatprep.subr.bf16.mxu0 0
  %304 = vmatpush1.bf16.msra.mxu0 0
  %305 = vmatprep.subr.bf16.mxu0 0
  %306 = vmatpush1.bf16.msra.mxu0 0
  %307 = vmatprep.subr.bf16.mxu0 0
  %308 = vmatpush1.bf16.msra.mxu0 0
  %309 = vmatprep.subr.bf16.mxu0 0
  %310 = vmatpush1.bf16.msra.mxu0 0
  %311 = vmatprep.subr.bf16.mxu0 0
  %312 = vmatpush1.bf16.msra.mxu0 0
  %313 = vmatprep.mubr.bf16.mxu0 0
  %314 = vmatmul.mubr.bf16.gmra.mrb[0].mxu0 %v231
  %v315 = vpop.f32.mrb[0].mxu0
  %v316 = vadd.f32 0.0, %v315
  %v317 = vpop.f32.mrb[0].mxu0
  %v318 = vpop.f32.mrb[0].mxu0
  %v319 = vpop.f32.mrb[0].mxu0
  %320 = vdwg.mxu0
  %v337 = vunpack.c.l.b16 %v197
  %v338 = vunpack.c.l.b16 %v198
  %v339 = vunpack.c.l.b16 %v199
  %v340 = vunpack.c.l.b16 %v200
  %v341 = vunpack.c.l.b16 %v201
  %v342 = vunpack.c.l.b16 %v202
  %v343 = vunpack.c.l.b16 %v203
  %v344 = vunpack.c.l.b16 %v204
  %v345 = vunpack.c.l.b16 %v205
  %v346 = vunpack.c.l.b16 %v206
  %v347 = vunpack.c.l.b16 %v207
  %v348 = vunpack.c.l.b16 %v208
  %v349 = vunpack.c.l.b16 %v209
  %v350 = vunpack.c.l.b16 %v210
  %v351 = vunpack.c.l.b16 %v211
  %v352 = vunpack.c.l.b16 %v212
  %v353 = vpack.c.b16 %v338, %v337
  %v354 = vpack.c.b16 %v340, %v339
  %v355 = vpack.c.b16 %v342, %v341
  %v356 = vpack.c.b16 %v344, %v343
  %v357 = vpack.c.b16 %v346, %v345
  %v358 = vpack.c.b16 %v348, %v347
  %v359 = vpack.c.b16 %v350, %v349
  %v360 = vpack.c.b16 %v352, %v351
  %369 = vmatprep.subr.bf16.mxu0 0
  %370 = vmatpush1.bf16.msra.mxu0 %v353
  %371 = vmatprep.subr.bf16.mxu0 0
  %372 = vmatpush1.bf16.msra.mxu0 %v354
  %373 = vmatprep.subr.bf16.mxu0 0
  %374 = vmatpush1.bf16.msra.mxu0 %v355
  %375 = vmatprep.subr.bf16.mxu0 0
  %376 = vmatpush1.bf16.msra.mxu0 %v356
  %377 = vmatprep.subr.bf16.mxu0 0
  %378 = vmatpush1.bf16.msra.mxu0 %v357
  %379 = vmatprep.subr.bf16.mxu0 0
  %380 = vmatpush1.bf16.msra.mxu0 %v358
  %381 = vmatprep.subr.bf16.mxu0 0
  %382 = vmatpush1.bf16.msra.mxu0 %v359
  %383 = vmatprep.subr.bf16.mxu0 0
  %384 = vmatpush1.bf16.msra.mxu0 %v360
  %385 = vmatprep.subr.bf16.mxu0 0
  %386 = vmatpush1.bf16.msra.mxu0 0
  %387 = vmatprep.subr.bf16.mxu0 0
  %388 = vmatpush1.bf16.msra.mxu0 0
  %389 = vmatprep.subr.bf16.mxu0 0
  %390 = vmatpush1.bf16.msra.mxu0 0
  %391 = vmatprep.subr.bf16.mxu0 0
  %392 = vmatpush1.bf16.msra.mxu0 0
  %393 = vmatprep.subr.bf16.mxu0 0
  %394 = vmatpush1.bf16.msra.mxu0 0
  %395 = vmatprep.subr.bf16.mxu0 0
  %396 = vmatpush1.bf16.msra.mxu0 0
  %397 = vmatprep.subr.bf16.mxu0 0
  %398 = vmatpush1.bf16.msra.mxu0 0
  %399 = vmatprep.subr.bf16.mxu0 0
  %400 = vmatpush1.bf16.msra.mxu0 0
  %401 = vmatprep.mubr.bf16.mxu0 0
  %402 = vmatmul.mubr.bf16.gmra.mrb[0].mxu0 %v196
  %v403 = vpop.f32.mrb[0].mxu0
  %v404 = vadd.f32 %v316, %v403
  %v405 = vpop.f32.mrb[0].mxu0
  %v406 = vpop.f32.mrb[0].mxu0
  %v407 = vpop.f32.mrb[0].mxu0
  %408 = vdwg.mxu0
  %s409 = scalar_lea.vmem %s2, 128
  %v410 = vld [vmem:[%s409] sm:$0xf]
  %v411 = vld [vmem:[%s409 + $0x4] sm:$0xf]
  %v412 = vld [vmem:[%s409 + $0x8] sm:$0xf]
  %v413 = vld [vmem:[%s409 + $0xc] sm:$0xf]
  %v414 = vld [vmem:[%s409 + $0x10] sm:$0xf]
  %v415 = vld [vmem:[%s409 + $0x14] sm:$0xf]
  %v416 = vld [vmem:[%s409 + $0x18] sm:$0xf]
  %v417 = vld [vmem:[%s409 + $0x1c] sm:$0xf]
  %v418 = vld [vmem:[%s409 + $0x20] sm:$0xf]
  %v419 = vld [vmem:[%s409 + $0x24] sm:$0xf]
  %v420 = vld [vmem:[%s409 + $0x28] sm:$0xf]
  %v421 = vld [vmem:[%s409 + $0x2c] sm:$0xf]
  %v422 = vld [vmem:[%s409 + $0x30] sm:$0xf]
  %v423 = vld [vmem:[%s409 + $0x34] sm:$0xf]
  %v424 = vld [vmem:[%s409 + $0x38] sm:$0xf]
  %v425 = vld [vmem:[%s409 + $0x3c] sm:$0xf]
  %v426 = vrot.slane %v196, 2
  %v444 = vunpack.c.l.b16 %v410
  %v445 = vunpack.c.l.b16 %v411
  %v446 = vunpack.c.l.b16 %v412
  %v447 = vunpack.c.l.b16 %v413
  %v448 = vunpack.c.l.b16 %v414
  %v449 = vunpack.c.l.b16 %v415
  %v450 = vunpack.c.l.b16 %v416
  %v451 = vunpack.c.l.b16 %v417
  %v452 = vunpack.c.l.b16 %v418
  %v453 = vunpack.c.l.b16 %v419
  %v454 = vunpack.c.l.b16 %v420
  %v455 = vunpack.c.l.b16 %v421
  %v456 = vunpack.c.l.b16 %v422
  %v457 = vunpack.c.l.b16 %v423
  %v458 = vunpack.c.l.b16 %v424
  %v459 = vunpack.c.l.b16 %v425
  %v460 = vpack.c.b16 %v445, %v444
  %v461 = vpack.c.b16 %v447, %v446
  %v462 = vpack.c.b16 %v449, %v448
  %v463 = vpack.c.b16 %v451, %v450
  %v464 = vpack.c.b16 %v453, %v452
  %v465 = vpack.c.b16 %v455, %v454
  %v466 = vpack.c.b16 %v457, %v456
  %v467 = vpack.c.b16 %v459, %v458
  %476 = vmatprep.subr.bf16.mxu0 0
  %477 = vmatpush1.bf16.msra.mxu0 %v460
  %478 = vmatprep.subr.bf16.mxu0 0
  %479 = vmatpush1.bf16.msra.mxu0 %v461
  %480 = vmatprep.subr.bf16.mxu0 0
  %481 = vmatpush1.bf16.msra.mxu0 %v462
  %482 = vmatprep.subr.bf16.mxu0 0
  %483 = vmatpush1.bf16.msra.mxu0 %v463
  %484 = vmatprep.subr.bf16.mxu0 0
  %485 = vmatpush1.bf16.msra.mxu0 %v464
  %486 = vmatprep.subr.bf16.mxu0 0
  %487 = vmatpush1.bf16.msra.mxu0 %v465
  %488 = vmatprep.subr.bf16.mxu0 0
  %489 = vmatpush1.bf16.msra.mxu0 %v466
  %490 = vmatprep.subr.bf16.mxu0 0
  %491 = vmatpush1.bf16.msra.mxu0 %v467
  %492 = vmatprep.subr.bf16.mxu0 0
  %493 = vmatpush1.bf16.msra.mxu0 0
  %494 = vmatprep.subr.bf16.mxu0 0
  %495 = vmatpush1.bf16.msra.mxu0 0
  %496 = vmatprep.subr.bf16.mxu0 0
  %497 = vmatpush1.bf16.msra.mxu0 0
  %498 = vmatprep.subr.bf16.mxu0 0
  %499 = vmatpush1.bf16.msra.mxu0 0
  %500 = vmatprep.subr.bf16.mxu0 0
  %501 = vmatpush1.bf16.msra.mxu0 0
  %502 = vmatprep.subr.bf16.mxu0 0
  %503 = vmatpush1.bf16.msra.mxu0 0
  %504 = vmatprep.subr.bf16.mxu0 0
  %505 = vmatpush1.bf16.msra.mxu0 0
  %506 = vmatprep.subr.bf16.mxu0 0
  %507 = vmatpush1.bf16.msra.mxu0 0
  %508 = vmatprep.mubr.bf16.mxu0 0
  %509 = vmatmul.mubr.bf16.gmra.mrb[0].mxu0 %v426
  %v510 = vpop.f32.mrb[0].mxu0
  %v511 = vadd.f32 0.0, %v510
  %v512 = vpop.f32.mrb[0].mxu0
  %v513 = vpop.f32.mrb[0].mxu0
  %v514 = vpop.f32.mrb[0].mxu0
  %515 = vdwg.mxu0
  %v516 = vadd.f32 %v404, %v511
  %s517 = scalar_lea.vmem %s2, 192
  %v518 = vld [vmem:[%s517] sm:$0xf]
  %v519 = vld [vmem:[%s517 + $0x4] sm:$0xf]
  %v520 = vld [vmem:[%s517 + $0x8] sm:$0xf]
  %v521 = vld [vmem:[%s517 + $0xc] sm:$0xf]
  %v522 = vld [vmem:[%s517 + $0x10] sm:$0xf]
  %v523 = vld [vmem:[%s517 + $0x14] sm:$0xf]
  %v524 = vld [vmem:[%s517 + $0x18] sm:$0xf]
  %v525 = vld [vmem:[%s517 + $0x1c] sm:$0xf]
  %v526 = vld [vmem:[%s517 + $0x20] sm:$0xf]
  %v527 = vld [vmem:[%s517 + $0x24] sm:$0xf]
  %v528 = vld [vmem:[%s517 + $0x28] sm:$0xf]
  %v529 = vld [vmem:[%s517 + $0x2c] sm:$0xf]
  %v530 = vld [vmem:[%s517 + $0x30] sm:$0xf]
  %v531 = vld [vmem:[%s517 + $0x34] sm:$0xf]
  %v532 = vld [vmem:[%s517 + $0x38] sm:$0xf]
  %v533 = vld [vmem:[%s517 + $0x3c] sm:$0xf]
  %v534 = vrot.slane %v196, 3
  %v552 = vunpack.c.l.b16 %v518
  %v553 = vunpack.c.l.b16 %v519
  %v554 = vunpack.c.l.b16 %v520
  %v555 = vunpack.c.l.b16 %v521
  %v556 = vunpack.c.l.b16 %v522
  %v557 = vunpack.c.l.b16 %v523
  %v558 = vunpack.c.l.b16 %v524
  %v559 = vunpack.c.l.b16 %v525
  %v560 = vunpack.c.l.b16 %v526
  %v561 = vunpack.c.l.b16 %v527
  %v562 = vunpack.c.l.b16 %v528
  %v563 = vunpack.c.l.b16 %v529
  %v564 = vunpack.c.l.b16 %v530
  %v565 = vunpack.c.l.b16 %v531
  %v566 = vunpack.c.l.b16 %v532
  %v567 = vunpack.c.l.b16 %v533
  %v568 = vpack.c.b16 %v553, %v552
  %v569 = vpack.c.b16 %v555, %v554
  %v570 = vpack.c.b16 %v557, %v556
  %v571 = vpack.c.b16 %v559, %v558
  %v572 = vpack.c.b16 %v561, %v560
  %v573 = vpack.c.b16 %v563, %v562
  %v574 = vpack.c.b16 %v565, %v564
  %v575 = vpack.c.b16 %v567, %v566
  %584 = vmatprep.subr.bf16.mxu0 0
  %585 = vmatpush1.bf16.msra.mxu0 %v568
  %586 = vmatprep.subr.bf16.mxu0 0
  %587 = vmatpush1.bf16.msra.mxu0 %v569
  %588 = vmatprep.subr.bf16.mxu0 0
  %589 = vmatpush1.bf16.msra.mxu0 %v570
  %590 = vmatprep.subr.bf16.mxu0 0
  %591 = vmatpush1.bf16.msra.mxu0 %v571
  %592 = vmatprep.subr.bf16.mxu0 0
  %593 = vmatpush1.bf16.msra.mxu0 %v572
  %594 = vmatprep.subr.bf16.mxu0 0
  %595 = vmatpush1.bf16.msra.mxu0 %v573
  %596 = vmatprep.subr.bf16.mxu0 0
  %597 = vmatpush1.bf16.msra.mxu0 %v574
  %598 = vmatprep.subr.bf16.mxu0 0
  %599 = vmatpush1.bf16.msra.mxu0 %v575
  %600 = vmatprep.subr.bf16.mxu0 0
  %601 = vmatpush1.bf16.msra.mxu0 0
  %602 = vmatprep.subr.bf16.mxu0 0
  %603 = vmatpush1.bf16.msra.mxu0 0
  %604 = vmatprep.subr.bf16.mxu0 0
  %605 = vmatpush1.bf16.msra.mxu0 0
  %606 = vmatprep.subr.bf16.mxu0 0
  %607 = vmatpush1.bf16.msra.mxu0 0
  %608 = vmatprep.subr.bf16.mxu0 0
  %609 = vmatpush1.bf16.msra.mxu0 0
  %610 = vmatprep.subr.bf16.mxu0 0
  %611 = vmatpush1.bf16.msra.mxu0 0
  %612 = vmatprep.subr.bf16.mxu0 0
  %613 = vmatpush1.bf16.msra.mxu0 0
  %614 = vmatprep.subr.bf16.mxu0 0
  %615 = vmatpush1.bf16.msra.mxu0 0
  %616 = vmatprep.mubr.bf16.mxu0 0
  %617 = vmatmul.mubr.bf16.gmra.mrb[0].mxu0 %v534
  %v618 = vpop.f32.mrb[0].mxu0
  %v619 = vadd.f32 0.0, %v618
  %v620 = vpop.f32.mrb[0].mxu0
  %v621 = vpop.f32.mrb[0].mxu0
  %v622 = vpop.f32.mrb[0].mxu0
  %623 = vdwg.mxu0
  %v624 = vadd.f32 %v516, %v619
  %v625 = vadd.f32 %v624, 0.0
  %v626 = vld [vmem:[%s3] sm:$0x3]
  %v627 = vadd.f32 %v625, %v626
  %v628 = vmul.f32 %v627, 1.4999925
  %v629 = vxor.u32 %v628, 2147483648
  %v630 = vmul.f32 %v629, 1.442695
  %v631 = vpow.pop %v630
  %v632 = vadd.f32 %v631, 1.0
  %v633 = vrcp.pop %v632
  %v634 = vmul.f32 1.0, %v633
  %vm635 = vcmp.ge.f32.partialorder %v634, 0.5
  %v636 = vsel %vm635, 1, 0
  %v637 = vcvt.s32.f32 %v636
  %638 = vst [vmem:[%s4] sm:$0x3] %v637
  %639 = vst [vmem:[%s5] sm:$0x3] %v634
  // Predicated region
  $region18: #{fwd.1} parent=0 // pred_check
    _
  $region19: #{fwd.1} parent=0 // pred_check_branch
    %641 = sbr.rel (0) target = $region21
  $region20: #{fwd.1} parent=0 // pred_region
    _
  $region21: #{fwd.1} parent=0 // pred_fallthru
    _
  // Predicated region
  $region22: #{fwd.1} parent=0 // pred_check
    _
  $region23: #{fwd.1} parent=0 // pred_check_branch
    %643 = sbr.rel (0) target = $region25
  $region24: #{fwd.1} parent=0 // pred_region
    _
  $region25: #{fwd.1} parent=0 // pred_fallthru
    _
  // Predicated region
  $region26: #{fwd.1} parent=0 // pred_check
    _
  $region27: #{fwd.1} parent=0 // pred_check_branch
    %645 = sbr.rel (0) target = $region29
  $region28: #{fwd.1} parent=0 // pred_region
    _
  $region29: #{fwd.1} parent=0 // pred_fallthru
    _
  // Predicated region
  $region30: #{fwd.1} parent=0 // pred_check
    _
  $region31: #{fwd.1} parent=0 // pred_check_branch
    %647 = sbr.rel (0) target = $region33
  $region32: #{fwd.1} parent=0 // pred_region
    _
  $region33: #{fwd.1} parent=0 // pred_fallthru
    _

</llo_original>
